<compile_context>
chip_gen: v6e
topology: v6e:2x2x1
jax: 0.10.0
libtpu: 0.0.40
codegen_flags: <defaults>
</compile_context>

<pallas_src>
import math
import functools

import jax
import jax.numpy as jnp
from jax.experimental import pallas as pl
from jax.experimental.pallas import tpu as pltpu

PAD_IDX = 0  # the reference module uses an (externally defined) PAD_IDX; assume 0

_N_GATHER_SEMS = 8  # shared DMA-semaphore pool for the HBM gather path


def _round_up(x, m):
    return ((x + m - 1) // m) * m


# ----------------------------------------------------------------------------
# Fast path: embedding table resident in VMEM, in-kernel dynamic row reads.
# ----------------------------------------------------------------------------
def _embedding_gather_vmem_kernel(ids_ref, table_ref, out_ref, *, tile_n, scale):
    # ids_ref   : (n_padded,) int32 in SMEM (scalar prefetch)
    # table_ref : (vocab, d_model) in VMEM (full array, constant block index)
    # out_ref   : (tile_n, d_model) output tile in VMEM
    base = pl.program_id(0) * tile_n

    @pl.loop(0, tile_n)
    def _copy_row(t):
        tok = ids_ref[base + t]
        out_ref[pl.ds(t, 1), :] = table_ref[pl.ds(tok, 1), :]

    # One full-tile VPU pass for the sqrt(d_model) scale.
    out_ref[...] = (out_ref[...] * scale).astype(out_ref.dtype)


# ----------------------------------------------------------------------------
# Large-vocab path: table stays in HBM, per-row DMAs straight into out_ref.
# ----------------------------------------------------------------------------
def _embedding_gather_hbm_kernel(ids_ref, emb_hbm_ref, out_ref, sems, *,
                                 tile_n, scale):
    # ids_ref     : (n_padded,) int32 in SMEM (scalar prefetch)
    # emb_hbm_ref : (vocab, d_model) in HBM (memory_space=pl.ANY, manual DMA)
    # out_ref     : (tile_n, d_model) output tile in VMEM (DMA destination)
    # sems        : (_N_GATHER_SEMS,) shared DMA semaphores
    base = pl.program_id(0) * tile_n

    def row_copy(t):
        # Re-reading the id from SMEM keeps issue/wait descriptors identical
        # (same src slice, same dst slice, same semaphore, same byte count).
        tok = ids_ref[base + t]
        return pltpu.make_async_copy(
            emb_hbm_ref.at[pl.ds(tok, 1), :],
            out_ref.at[pl.ds(t, 1), :],
            sems.at[t % _N_GATHER_SEMS],
        )

    # Issue all row gathers for this tile; they execute concurrently.
    @pl.loop(0, tile_n)
    def _issue(t):
        row_copy(t).start()

    # Wait for all of them (all rows are the same size, so the shared
    # semaphores' increments/decrements match one-to-one).
    @pl.loop(0, tile_n)
    def _wait(t):
        row_copy(t).wait()

    # Scale in place; no intermediate scratch buffer.
    out_ref[...] = (out_ref[...] * scale).astype(out_ref.dtype)


# ----------------------------------------------------------------------------
# Wrapper
# ----------------------------------------------------------------------------
def embeddings_forward(x, emb_table, *, tile_n=256,
                       table_vmem_budget=12 * 1024 * 1024, force_path=None):
    """x: (batch, seq) integer ids.  Returns (batch, seq, d_model) in table dtype."""
    batch, seq = x.shape
    vocab, d_model = emb_table.shape
    n = batch * seq
    itemsize = emb_table.dtype.itemsize
    scale = math.sqrt(d_model)

    # Sublane packing for the dtype: 8 for 4-byte, 16 for 2-byte, 32 for 1-byte.
    sub = max(8, 32 // itemsize)
    tile_n = max(sub, min(tile_n, _round_up(n, sub)))
    tile_n = _round_up(tile_n, sub)
    n_padded = _round_up(n, tile_n)

    ids = jnp.clip(x.astype(jnp.int32).reshape(n), 0, vocab - 1)
    if n_padded != n:
        ids = jnp.concatenate(
            [ids, jnp.full((n_padded - n,), PAD_IDX, dtype=jnp.int32)])

    table_bytes = vocab * d_model * itemsize
    use_vmem_table = table_bytes <= table_vmem_budget
    if force_path == "hbm":
        use_vmem_table = False
    elif force_path == "vmem":
        use_vmem_table = True

    out_block_bytes = tile_n * d_model * itemsize
    need = (table_bytes if use_vmem_table else 0) + 4 * out_block_bytes + (1 << 20)
    vmem_limit_bytes = int(min(64 * 1024 * 1024, max(2 * need, 16 * 1024 * 1024)))

    cost = pl.CostEstimate(
        flops=n_padded * d_model,                # one mul per output element
        transcendentals=0,
        bytes_accessed=(2 * n_padded * d_model * itemsize   # gather read + write
                        + n_padded * 4                      # ids
                        + (table_bytes if use_vmem_table else 0)),
    )

    out_spec = pl.BlockSpec((tile_n, d_model), lambda i, ids: (i, 0))

    if use_vmem_table:
        kernel = functools.partial(_embedding_gather_vmem_kernel,
                                   tile_n=tile_n, scale=scale)
        in_specs = [pl.BlockSpec((vocab, d_model), lambda i, ids: (0, 0))]
        scratch_shapes = []
    else:
        kernel = functools.partial(_embedding_gather_hbm_kernel,
                                   tile_n=tile_n, scale=scale)
        in_specs = [pl.BlockSpec(memory_space=pl.ANY)]   # table stays in HBM
        scratch_shapes = [pltpu.SemaphoreType.DMA((_N_GATHER_SEMS,))]

    out_flat = pl.pallas_call(
        kernel,
        out_shape=jax.ShapeDtypeStruct((n_padded, d_model), emb_table.dtype),
        grid_spec=pltpu.PrefetchScalarGridSpec(
            num_scalar_prefetch=1,                       # ids -> SMEM
            grid=(n_padded // tile_n,),
            in_specs=in_specs,
            out_specs=out_spec,
            scratch_shapes=scratch_shapes,
        ),
        compiler_params=pltpu.CompilerParams(
            dimension_semantics=("parallel",),           # independent tiles (2 TCs on v7x)
            vmem_limit_bytes=vmem_limit_bytes,
        ),
        cost_estimate=cost,
    )(ids, emb_table)

    out_flat = out_flat[:n]
    return out_flat.reshape(batch, seq, d_model)


def make_embedding_table(key, vocab, d_model):
    """Deterministic init matching nn.Embedding(vocab, d_model, padding_idx=PAD_IDX)."""
    w = jax.random.normal(key, (vocab, d_model), dtype=jnp.float32)
    # PyTorch zeroes the padding_idx row.
    w = w.at[PAD_IDX].set(0.0)
    return w


if __name__ == "__main__":
    key = jax.random.PRNGKey(0)
    k_ids, k_emb = jax.random.split(key)

    batch, seq = 2, 8
    vocab, d_model = 1000, 128   # d_model multiple of 128 -> lane-dense stores

    x = jax.random.randint(k_ids, (batch, seq), minval=0, maxval=vocab,
                           dtype=jnp.int32)
    # include a padding token to exercise padding_idx semantics
    x = x.at[0, 0].set(PAD_IDX)

    emb_table = make_embedding_table(k_emb, vocab, d_model)

    # pure-JAX reference
    ref = emb_table[x] * math.sqrt(d_model)

    # Default dispatch (table fits VMEM -> resident-table fast path).
    out_vmem = jax.block_until_ready(embeddings_forward(x, emb_table))
    # Also exercise the large-vocab HBM DMA-gather path.
    out_hbm = jax.block_until_ready(
        embeddings_forward(x, emb_table, force_path="hbm"))

    for out in (out_vmem, out_hbm):
        assert out.shape == (batch, seq, d_model)
        assert jnp.allclose(out, ref, atol=1e-5, rtol=1e-5)
        assert jnp.all(out[0, 0] == 0.0)  # padding row stays zero

    print("KERNEL_OK")
</pallas_src>

<mosaic_0001>
module attributes {stable_mosaic.version = 11 : i64} {
  func.func @_embedding_gather_vmem_kernel(%arg0: i32, %arg1: memref<16xi32, #tpu.memory_space<smem>>, %arg2: memref<1000x128xf32, #tpu.memory_space<vmem>>, %arg3: memref<16x128xf32, #tpu.memory_space<vmem>>) attributes {dimension_semantics = [#tpu.dimension_semantics<parallel>], iteration_bounds = array<i64: 1>, scalar_prefetch = 1 : i64, scratch_operands = 0 : i64, tpu.core_type = #tpu.core_type<tc>, window_params = [{pipeline_mode = #tpu.pipeline_mode<synchronous>, transform_indices = @transform_0, window_bounds = array<i64: 1000, 128>}, {transform_indices = @transform_1, window_bounds = array<i64: 16, 128>}]} {
    %c16_i32 = arith.constant 16 : i32
    %0 = arith.muli %arg0, %c16_i32 : i32
    %c0_i32 = arith.constant 0 : i32
    %c16_i32_0 = arith.constant 16 : i32
    %1 = arith.addi %c0_i32, %c16_i32_0 : i32
    %c1_i32 = arith.constant 1 : i32
    scf.for %arg4 = %c0_i32 to %1 step %c1_i32  : i32 {
      %c1_i32_5 = arith.constant 1 : i32
      %6 = arith.muli %arg4, %c1_i32_5 : i32
      %c0_i32_6 = arith.constant 0 : i32
      %7 = arith.addi %c0_i32_6, %6 : i32
      %8 = arith.addi %0, %7 : i32
      %9 = arith.index_cast %8 : i32 to index
      %10 = memref.load %arg1[%9] : memref<16xi32, #tpu.memory_space<smem>>
      %11 = arith.index_cast %10 : i32 to index
      %c0_7 = arith.constant 0 : index
      %12 = vector.load %arg2[%11, %c0_7] : memref<1000x128xf32, #tpu.memory_space<vmem>>, vector<1x128xf32>
      %13 = arith.index_cast %7 : i32 to index
      %c0_8 = arith.constant 0 : index
      %14 = vector.load %arg3[%13, %c0_8] : memref<16x128xf32, #tpu.memory_space<vmem>>, vector<1x128xf32>
      tpu.vector_store %arg3[%13, %c0_8], %12 {strides = array<i32>} : memref<16x128xf32, #tpu.memory_space<vmem>>, vector<1x128xf32>,
    }
    %c16_i32_1 = arith.constant 16 : i32
    %c0 = arith.constant 0 : index
    %c0_2 = arith.constant 0 : index
    %2 = vector.load %arg3[%c0, %c0_2] : memref<16x128xf32, #tpu.memory_space<vmem>>, vector<16x128xf32>
    %cst = arith.constant 11.3137083 : f32
    %3 = vector.broadcast %cst : f32 to vector<16x128xf32>
    %4 = arith.mulf %2, %3 : vector<16x128xf32>
    %c0_3 = arith.constant 0 : index
    %c0_4 = arith.constant 0 : index
    %5 = vector.load %arg3[%c0_3, %c0_4] : memref<16x128xf32, #tpu.memory_space<vmem>>, vector<16x128xf32>
    tpu.vector_store %arg3[%c0_3, %c0_4], %4 {strides = array<i32>} : memref<16x128xf32, #tpu.memory_space<vmem>>, vector<16x128xf32>,
    return
  }
  func.func @transform_0(%arg0: i32, %arg1: memref<16xi32, #tpu.memory_space<smem>>) -> (i32, i32) {
    %c0_i32 = arith.constant 0 : i32
    %c0_i32_0 = arith.constant 0 : i32
    %c0_i32_1 = arith.constant 0 : i32
    return %c0_i32, %c0_i32_0 : i32, i32
  }
  func.func @transform_1(%arg0: i32, %arg1: memref<16xi32, #tpu.memory_space<smem>>) -> (i32, i32) {
    %c0_i32 = arith.constant 0 : i32
    %c0_i32_0 = arith.constant 0 : i32
    return %arg0, %c0_i32 : i32, i32
  }
}

</mosaic_0001>

<llo_original>
// kernel: tpu_custom_call.1
$region0: #{tpu_custom_call.1}
  #allocation0 [shape = 'u32[]', space=smem, size = 0x4, offset = 0x4, fixed_abs, tag = 'smem constant byte address 0x4 - core index']
  #allocation1 [shape = 'u32[144,128]{1,0:T(1,128)}', space=vmem, size = 0x12000, scoped, tag = 'internal scratch']
  #allocation2 [shape = 's32[1]{0}', space=sflag, size = 0x4, scoped, tag = 'scoped memory for tpu_custom_call.1']
  #allocation3 [shape = 'u8[512]{0}', space=smem, size = 0x200, scoped, tag = 'prefetched SMEM operand 0']
  %s0 = inlined_call_operand.hbm [shape: s32[16], index: 0, kind: input, shape index: {}]
  %s1 = inlined_call_operand.hbm [shape: f32[1000,128], index: 1, kind: input, shape index: {}]
  %s2 = inlined_call_operand.hbm [shape: f32[16,128], index: 2, kind: output, shape index: {}]
  %s3 = sld [smem:[#allocation0]]
  $region25: #{tpu_custom_call.1} parent=0
    _
  %s5 = ssub.s32 1, %s3
  %s6 = scalar_select 0, %s5, %s3
  %8 = dma.hbm_to_smem %s0, 16, [#allocation3], [#allocation2]
  %9 = dma.done [#allocation2], 16
  %10 = sfence
  $region1: #{tpu_custom_call.1} parent=0
    #allocation4 [shape = 'u8[512000]{0}', space=vmem, size = 0x7d000, scoped, tag = 'input window, operand 1, single buffered']
    #allocation5 [shape = 's32[1]{0}', space=sflag, size = 0x4, scoped, tag = 'scoped memory for tpu_custom_call.1']
    #allocation6 [shape = 's32[1]{0}', space=sflag, size = 0x4, scoped, tag = 'scoped memory for tpu_custom_call.1']
    #allocation7 [shape = 'u8[8192]{0}', space=vmem, size = 0x2000, scoped, tag = 'output window, operand 0, single buffered']
    %11 = vsyncpa [#allocation5], 0
    %12 = vsyncpa [#allocation6], 0
    // Predicated region
    $region2: #{tpu_custom_call.1} parent=1 // pred_check
      _
    $region3: #{tpu_custom_call.1} parent=1 // pred_check_branch
      %14 = sbr.rel (0) target = $region5
    $region4: #{tpu_custom_call.1} parent=1 // pred_region
      %s16 = ssub.s32 16000, 16000
      %17 = vsyncadd [#allocation5], %s16
      %s18 = sshll.u32 [#allocation4], 4
      %s19 = int_to_ptr.vmem [resolvable:$true] %s18
      %24 = dma.hbm_to_vmem [thread:$0]  %s1, 16000, %s19, [#allocation5], 128, 128, 8
    $region5: #{tpu_custom_call.1} parent=1 // pred_fallthru
      _
    // Predicated region
    $region6: #{tpu_custom_call.1} parent=1 // pred_check
      _
    $region7: #{tpu_custom_call.1} parent=1 // pred_check_branch
      %26 = sbr.rel (0) target = $region9
    $region8: #{tpu_custom_call.1} parent=1 // pred_region
      %27 = dma.done [#allocation5], 16000
    $region9: #{tpu_custom_call.1} parent=1 // pred_fallthru
      _
    %s28 = smul.u32 0, 16
    loop: start=0, step=1, limit=16
    $region10: #{tpu_custom_call.1} parent=1 // loop_pre_header
      _
    $region11: #{tpu_custom_call.1} parent=1 // loop_header
      %s30 = sphi 0, %s34
      %p31 = scmp.ge.s32.totalorder %s30, 16
    $region12: #{tpu_custom_call.1} parent=1 // loop_header_branch
      %33 = sbr.rel (%p31) target = $region16
    $region13: #{tpu_custom_call.1} parent=1 // loop_body
      %s35 = sadd.s32 %s28, %s30
      %s36 = sld [smem:[#allocation3 + %s35]]
      %s37 = scalar_lea.vmem [#allocation4], %s36
      %v38 = vld [vmem:[%s37] sm:$0x1]
      %s39 = scalar_lea.vmem [#allocation7], %s30
      %40 = vst [vmem:[%s39] sm:$0x1] %v38
    $region14: #{tpu_custom_call.1} parent=1 // loop_footer
      %s34 = sadd.s32 1, %s30
    $region15: #{tpu_custom_call.1} parent=1 // loop_footer_branch
      %29 = sbr.rel target = $region11
    $region16: #{tpu_custom_call.1} parent=1 // loop_exit
      _
    %v41 = vld [vmem:[#allocation7] sm:$0xff]
    %v42 = vld [vmem:[#allocation7 + $0x8] sm:$0xff]
    %v43 = vmul.f32 %v41, 11.313708
    %v44 = vmul.f32 %v42, 11.313708
    %45 = vst [vmem:[#allocation7] sm:$0xff] %v43
    %46 = vst [vmem:[#allocation7 + $0x8] sm:$0xff] %v44
    // Predicated region
    $region17: #{tpu_custom_call.1} parent=1 // pred_check
      _
    $region18: #{tpu_custom_call.1} parent=1 // pred_check_branch
      %48 = sbr.rel (0) target = $region20
    $region19: #{tpu_custom_call.1} parent=1 // pred_region
      %s50 = ssub.s32 256, 256
      %51 = vsyncadd [#allocation6], %s50
      %s52 = sshll.u32 [#allocation7], 4
      %s53 = int_to_ptr.vmem [resolvable:$true] %s52
      %58 = dma.vmem_to_hbm [thread:$0]  %s53, 256, %s2, [#allocation6], 128, 128, 8
    $region20: #{tpu_custom_call.1} parent=1 // pred_fallthru
      _
    // Predicated region
    $region21: #{tpu_custom_call.1} parent=1 // pred_check
      _
    $region22: #{tpu_custom_call.1} parent=1 // pred_check_branch
      %60 = sbr.rel (0) target = $region24
    $region23: #{tpu_custom_call.1} parent=1 // pred_region
      %61 = dma.done [#allocation6], 256
    $region24: #{tpu_custom_call.1} parent=1 // pred_fallthru
      _
    %62 = vsyncpa [#allocation5], 1
    %63 = vsyncpa [#allocation6], 1

</llo_original>
